<compile_context>
chip_gen: v7x
topology: tpu7x:2x2x1
jax: 0.10.0
libtpu: 0.0.40
codegen_flags: <defaults>
</compile_context>

<pallas_src>
import functools

import jax
import jax.numpy as jnp
from jax.experimental import pallas as pl
from jax.experimental.pallas import tpu as pltpu


def _round_up(x, m):
    return ((x + m - 1) // m) * m


def _largest_aligned_divisor(n, align, cap):
    """Largest d <= cap with d % align == 0 and n % d == 0, else None."""
    d = (min(cap, n) // align) * align
    while d >= align:
        if n % d == 0:
            return d
        d -= align
    return None


def _vmem_plan():
    """Return (vmem_limit_bytes, per-block VMEM footprint budget), generation-aware."""
    cap = 128 << 20
    try:
        cap = pltpu.get_tpu_info().vmem_capacity_bytes
    except Exception:  # conservative fallback if the query is unavailable
        pass
    if cap <= (64 << 20):            # v7x-class TensorCore: 64 MiB VMEM
        return 40 << 20, 24 << 20
    return 64 << 20, 40 << 20        # v5e / v6e: 128 MiB physical VMEM


# Past ~1 MiB of useful data per block the HBM-streaming roofline is flat (~85%),
# so cap useful input-block bytes to keep grid-level pipelining alive.
_USEFUL_BLOCK_TARGET = 4 << 20
# f32 temporaries materialized per block inside the kernel (x upcast, xc, x_hat,
# broadcasted affine) -- budgeted on top of the double-buffered I/O blocks.
_NUM_F32_TEMPS = 4


def _layer_norm2d_kernel(x_ref, w_ref, b_ref, o_ref, *, eps, inv_c):
    """x_ref/o_ref: (bn, C, T) or (bn, C, S, 128); channel axis is axis=1.

    w_ref/b_ref are shaped so they broadcast against the block ((C, 1) for the
    3-D layout, (1, C, 1, 128) for the 4-D layout)."""
    x = x_ref[...].astype(jnp.float32)
    mean = jnp.sum(x, axis=1, keepdims=True) * inv_c        # per spatial position
    xc = x - mean
    var = jnp.sum(xc * xc, axis=1, keepdims=True) * inv_c   # biased variance (two-pass, stable)
    x_hat = xc * jax.lax.rsqrt(var + eps)                   # rsqrt -> EUP slot
    w = w_ref[...]
    b = b_ref[...]
    if o_ref.dtype == jnp.bfloat16:
        # bf16 affine tail halves the VALU cost on v6e/v7x; stats stay in f32.
        y = x_hat.astype(jnp.bfloat16) * w.astype(jnp.bfloat16) + b.astype(jnp.bfloat16)
    else:
        y = x_hat * w.astype(jnp.float32) + b.astype(jnp.float32)
    o_ref[...] = y.astype(o_ref.dtype)


def layer_norm2d(x, weight, bias, eps=1e-6):
    """x: (N, C, H, W) NCHW; weight/bias: (C,). Returns (N, C, H, W)."""
    N, C, H, W = x.shape
    HW = H * W
    itemsize = x.dtype.itemsize
    vmem_limit, budget = _vmem_plan()
    kernel = functools.partial(_layer_norm2d_kernel, eps=eps, inv_c=1.0 / C)
    compiler_params = pltpu.CompilerParams(
        dimension_semantics=("parallel", "parallel"),
        vmem_limit_bytes=vmem_limit,
    )

    if HW % 128 == 0:
        # ---- Sublane-dense path: x viewed as (N, C, S, 128). ----
        S_total = HW // 128
        # VMEM cost per spatial position (covers all C channels):
        # 2x in + 2x out blocks in the I/O dtype, plus in-kernel f32 temporaries.
        col_cost = 4 * C * itemsize + _NUM_F32_TEMPS * C * 4
        max_cols = max(128, budget // col_cost)
        max_cols = min(max_cols, max(128, _USEFUL_BLOCK_TARGET // max(1, C * itemsize)))
        max_s = max(1, max_cols // 128)

        if S_total <= max_s:
            s_blk = S_total                                # whole image per block
            img_cols_pad = _round_up(S_total, 8) * 128     # sublane-padded image footprint
            bn = max(1, min(N, max_cols // img_cols_pad))  # fold small images over batch
        else:
            bn = 1
            max_s8 = max(8, (max_s // 8) * 8)
            s_blk = _largest_aligned_divisor(S_total, 8, max_s8) or max_s8
            s_blk = min(s_blk, S_total)

        grid = (pl.cdiv(N, bn), pl.cdiv(S_total, s_blk))
        x4 = x.reshape(N, C, S_total, 128)
        w4 = jnp.broadcast_to(weight.reshape(1, C, 1, 1), (1, C, 1, 128))
        b4 = jnp.broadcast_to(bias.reshape(1, C, 1, 1), (1, C, 1, 128))

        out = pl.pallas_call(
            kernel,
            out_shape=jax.ShapeDtypeStruct((N, C, S_total, 128), x.dtype),
            grid_spec=pltpu.PrefetchScalarGridSpec(
                num_scalar_prefetch=0,
                grid=grid,
                in_specs=[
                    pl.BlockSpec((bn, C, s_blk, 128), lambda n, s: (n, 0, s, 0)),
                    pl.BlockSpec((1, C, 1, 128), lambda n, s: (0, 0, 0, 0)),
                    pl.BlockSpec((1, C, 1, 128), lambda n, s: (0, 0, 0, 0)),
                ],
                out_specs=pl.BlockSpec((bn, C, s_blk, 128), lambda n, s: (n, 0, s, 0)),
            ),
            compiler_params=compiler_params,
        )(x4, w4, b4)
        return out.reshape(N, C, H, W)

    # ---- Fallback path (HW not a multiple of 128): channels on sublanes. ----
    sub_pack = max(1, 32 // itemsize)        # sublane packing: 8 (f32) / 16 (bf16) / 32 (int8)
    c_pad = _round_up(C, sub_pack)           # padded channel count of the I/O blocks
    c_pad32 = _round_up(C, 8)                # padded channel count of the f32 temps
    col_cost = 4 * c_pad * itemsize + _NUM_F32_TEMPS * c_pad32 * 4
    max_cols = max(128, budget // col_cost)
    max_cols = min(max_cols, max(128, _USEFUL_BLOCK_TARGET // max(1, C * itemsize)))

    if HW <= max_cols:
        t_blk = HW                                           # whole image per block
        bn = max(1, min(N, max_cols // _round_up(HW, 128)))  # fold small images over batch
    else:
        bn = 1
        t_blk = max(128, (max_cols // 128) * 128)

    grid = (pl.cdiv(N, bn), pl.cdiv(HW, t_blk))
    x3 = x.reshape(N, C, HW)
    w2 = weight.reshape(C, 1)
    b2 = bias.reshape(C, 1)

    out = pl.pallas_call(
        kernel,
        out_shape=jax.ShapeDtypeStruct((N, C, HW), x.dtype),
        grid_spec=pltpu.PrefetchScalarGridSpec(
            num_scalar_prefetch=0,
            grid=grid,
            in_specs=[
                pl.BlockSpec((bn, C, t_blk), lambda n, t: (n, 0, t)),
                pl.BlockSpec((C, 1), lambda n, t: (0, 0)),
                pl.BlockSpec((C, 1), lambda n, t: (0, 0)),
            ],
            out_specs=pl.BlockSpec((bn, C, t_blk), lambda n, t: (n, 0, t)),
        ),
        compiler_params=compiler_params,
    )(x3, w2, b2)
    return out.reshape(N, C, H, W)


def _reference(x, weight, bias, eps):
    mean = jnp.mean(x, axis=1, keepdims=True)
    var = jnp.mean((x - mean) ** 2, axis=1, keepdims=True)
    return (weight[None, :, None, None] * ((x - mean) / jnp.sqrt(var + eps))
            + bias[None, :, None, None])


if __name__ == "__main__":
    key = jax.random.PRNGKey(0)

    # Case 1: HW % 128 == 0 -> sublane-dense (N, C, S, 128) path.
    N, C, H, W = 2, 4, 16, 16
    k1, k2 = jax.random.split(key)
    x = jax.random.normal(k1, (N, C, H, W), dtype=jnp.float32)
    weight = jnp.ones((C,), dtype=jnp.float32) + 0.1 * jnp.arange(C, dtype=jnp.float32)
    bias = jnp.zeros((C,), dtype=jnp.float32) + 0.05 * jnp.arange(C, dtype=jnp.float32)
    out = jax.block_until_ready(layer_norm2d(x, weight, bias, eps=1e-6))
    ref = _reference(x, weight, bias, 1e-6)
    assert out.shape == (N, C, H, W)
    assert jnp.allclose(out, ref, atol=1e-5, rtol=1e-5)

    # Case 2: HW not a multiple of 128 -> fallback (N, C, HW) path.
    N2, C2, H2, W2 = 2, 6, 15, 15
    x2 = jax.random.normal(k2, (N2, C2, H2, W2), dtype=jnp.float32)
    w2 = jnp.ones((C2,), dtype=jnp.float32) + 0.1 * jnp.arange(C2, dtype=jnp.float32)
    b2 = jnp.zeros((C2,), dtype=jnp.float32) + 0.05 * jnp.arange(C2, dtype=jnp.float32)
    out2 = jax.block_until_ready(layer_norm2d(x2, w2, b2, eps=1e-6))
    ref2 = _reference(x2, w2, b2, 1e-6)
    assert out2.shape == (N2, C2, H2, W2)
    assert jnp.allclose(out2, ref2, atol=1e-5, rtol=1e-5)

    print("KERNEL_OK")
</pallas_src>

<mosaic_0001>
module attributes {stable_mosaic.version = 11 : i64} {
  func.func @_layer_norm2d_kernel(%arg0: i32, %arg1: i32, %arg2: memref<2x4x2x128xf32, #tpu.memory_space<vmem>>, %arg3: memref<1x4x1x128xf32, #tpu.memory_space<vmem>>, %arg4: memref<1x4x1x128xf32, #tpu.memory_space<vmem>>, %arg5: memref<2x4x2x128xf32, #tpu.memory_space<vmem>>) attributes {dimension_semantics = [#tpu.dimension_semantics<parallel>, #tpu.dimension_semantics<parallel>], iteration_bounds = array<i64: 1, 1>, scalar_prefetch = 0 : i64, scratch_operands = 0 : i64, tpu.core_type = #tpu.core_type<tc>, window_params = [{transform_indices = @transform_0, window_bounds = array<i64: 2, 4, 2, 128>}, {pipeline_mode = #tpu.pipeline_mode<synchronous>, transform_indices = @transform_1, window_bounds = array<i64: 1, 4, 1, 128>}, {pipeline_mode = #tpu.pipeline_mode<synchronous>, transform_indices = @transform_2, window_bounds = array<i64: 1, 4, 1, 128>}, {transform_indices = @transform_3, window_bounds = array<i64: 2, 4, 2, 128>}]} {
    %c0 = arith.constant 0 : index
    %c0_0 = arith.constant 0 : index
    %c0_1 = arith.constant 0 : index
    %c0_2 = arith.constant 0 : index
    %0 = vector.load %arg2[%c0, %c0_0, %c0_1, %c0_2] : memref<2x4x2x128xf32, #tpu.memory_space<vmem>>, vector<2x4x2x128xf32>
    %cst = arith.constant dense<0.000000e+00> : vector<2x2x128xf32>
    %1 = vector.multi_reduction <add>, %0, %cst [1] : vector<2x4x2x128xf32> to vector<2x2x128xf32>
    %2 = vector.shape_cast %1 : vector<2x2x128xf32> to vector<2x1x2x128xf32>
    %cst_3 = arith.constant 2.500000e-01 : f32
    %3 = vector.broadcast %cst_3 : f32 to vector<2x1x2x128xf32>
    %4 = arith.mulf %2, %3 : vector<2x1x2x128xf32>
    %5 = vector.broadcast %4 : vector<2x1x2x128xf32> to vector<2x4x2x128xf32>
    %6 = arith.subf %0, %5 : vector<2x4x2x128xf32>
    %7 = arith.mulf %6, %6 : vector<2x4x2x128xf32>
    %cst_4 = arith.constant dense<0.000000e+00> : vector<2x2x128xf32>
    %8 = vector.multi_reduction <add>, %7, %cst_4 [1] : vector<2x4x2x128xf32> to vector<2x2x128xf32>
    %9 = vector.shape_cast %8 : vector<2x2x128xf32> to vector<2x1x2x128xf32>
    %cst_5 = arith.constant 2.500000e-01 : f32
    %10 = vector.broadcast %cst_5 : f32 to vector<2x1x2x128xf32>
    %11 = arith.mulf %9, %10 : vector<2x1x2x128xf32>
    %cst_6 = arith.constant 9.99999997E-7 : f32
    %12 = vector.broadcast %cst_6 : f32 to vector<2x1x2x128xf32>
    %13 = arith.addf %11, %12 : vector<2x1x2x128xf32>
    %14 = math.rsqrt %13 : vector<2x1x2x128xf32>
    %15 = vector.broadcast %14 : vector<2x1x2x128xf32> to vector<2x4x2x128xf32>
    %16 = arith.mulf %6, %15 : vector<2x4x2x128xf32>
    %c0_7 = arith.constant 0 : index
    %c0_8 = arith.constant 0 : index
    %c0_9 = arith.constant 0 : index
    %c0_10 = arith.constant 0 : index
    %17 = vector.load %arg3[%c0_7, %c0_8, %c0_9, %c0_10] : memref<1x4x1x128xf32, #tpu.memory_space<vmem>>, vector<1x4x1x128xf32>
    %c0_11 = arith.constant 0 : index
    %c0_12 = arith.constant 0 : index
    %c0_13 = arith.constant 0 : index
    %c0_14 = arith.constant 0 : index
    %18 = vector.load %arg4[%c0_11, %c0_12, %c0_13, %c0_14] : memref<1x4x1x128xf32, #tpu.memory_space<vmem>>, vector<1x4x1x128xf32>
    %19 = vector.broadcast %17 : vector<1x4x1x128xf32> to vector<2x4x2x128xf32>
    %20 = arith.mulf %16, %19 : vector<2x4x2x128xf32>
    %21 = vector.broadcast %18 : vector<1x4x1x128xf32> to vector<2x4x2x128xf32>
    %22 = arith.addf %20, %21 : vector<2x4x2x128xf32>
    %c0_15 = arith.constant 0 : index
    %c0_16 = arith.constant 0 : index
    %c0_17 = arith.constant 0 : index
    %c0_18 = arith.constant 0 : index
    %23 = vector.load %arg5[%c0_15, %c0_16, %c0_17, %c0_18] : memref<2x4x2x128xf32, #tpu.memory_space<vmem>>, vector<2x4x2x128xf32>
    tpu.vector_store %arg5[%c0_15, %c0_16, %c0_17, %c0_18], %22 {strides = array<i32>} : memref<2x4x2x128xf32, #tpu.memory_space<vmem>>, vector<2x4x2x128xf32>,
    return
  }
  func.func @transform_0(%arg0: i32, %arg1: i32) -> (i32, i32, i32, i32) {
    %c0_i32 = arith.constant 0 : i32
    %c0_i32_0 = arith.constant 0 : i32
    %c0_i32_1 = arith.constant 0 : i32
    return %arg0, %c0_i32, %arg1, %c0_i32_0 : i32, i32, i32, i32
  }
  func.func @transform_1(%arg0: i32, %arg1: i32) -> (i32, i32, i32, i32) {
    %c0_i32 = arith.constant 0 : i32
    %c0_i32_0 = arith.constant 0 : i32
    %c0_i32_1 = arith.constant 0 : i32
    %c0_i32_2 = arith.constant 0 : i32
    %c0_i32_3 = arith.constant 0 : i32
    return %c0_i32, %c0_i32_0, %c0_i32_1, %c0_i32_2 : i32, i32, i32, i32
  }
  func.func @transform_2(%arg0: i32, %arg1: i32) -> (i32, i32, i32, i32) {
    %c0_i32 = arith.constant 0 : i32
    %c0_i32_0 = arith.constant 0 : i32
    %c0_i32_1 = arith.constant 0 : i32
    %c0_i32_2 = arith.constant 0 : i32
    %c0_i32_3 = arith.constant 0 : i32
    return %c0_i32, %c0_i32_0, %c0_i32_1, %c0_i32_2 : i32, i32, i32, i32
  }
  func.func @transform_3(%arg0: i32, %arg1: i32) -> (i32, i32, i32, i32) {
    %c0_i32 = arith.constant 0 : i32
    %c0_i32_0 = arith.constant 0 : i32
    %c0_i32_1 = arith.constant 0 : i32
    return %arg0, %c0_i32, %arg1, %c0_i32_0 : i32, i32, i32, i32
  }
}

</mosaic_0001>

<llo_original>
// kernel: tpu_custom_call.1
$region0: #{tpu_custom_call.1}
  #allocation0 [shape = 'u32[]', space=smem, size = 0x4, offset = 0x4, fixed_abs, tag = 'smem constant byte address 0x4 - core index']
  #allocation1 [shape = 'u32[144,128]{1,0:T(1,128)}', space=vmem, size = 0x12000, scoped, tag = 'internal scratch']
  %s0 = inlined_call_operand.hbm [shape: f32[2,4,2,128], index: 0, kind: input, shape index: {}]
  %s1 = inlined_call_operand.hbm [shape: f32[1,4,1,128], index: 1, kind: input, shape index: {}]
  %s2 = inlined_call_operand.hbm [shape: f32[1,4,1,128], index: 2, kind: input, shape index: {}]
  %s3 = inlined_call_operand.hbm [shape: f32[2,4,2,128], index: 3, kind: output, shape index: {}]
  %s4 = sld [smem:[#allocation0]]
  $region34: #{tpu_custom_call.1} parent=0
    _
  %s6 = ssub.s32 1, %s4
  %s7 = scalar_select 0, %s6, %s4
  $region1: #{tpu_custom_call.1} parent=0
    #allocation2 [shape = 'u8[8192]{0}', space=vmem, size = 0x2000, scoped, tag = 'input window, operand 0, single buffered']
    #allocation3 [shape = 's32[1]{0}', space=sflag, size = 0x4, scoped, tag = 'scoped memory for tpu_custom_call.1']
    #allocation4 [shape = 's32[1]{0}', space=sflag, size = 0x4, scoped, tag = 'scoped memory for tpu_custom_call.1']
    #allocation5 [shape = 'u8[2048]{0}', space=vmem, size = 0x800, scoped, tag = 'input window, operand 1, single buffered']
    #allocation6 [shape = 's32[1]{0}', space=sflag, size = 0x4, scoped, tag = 'scoped memory for tpu_custom_call.1']
    #allocation7 [shape = 'u8[2048]{0}', space=vmem, size = 0x800, scoped, tag = 'input window, operand 2, single buffered']
    #allocation8 [shape = 'u8[8192]{0}', space=vmem, size = 0x2000, scoped, tag = 'output window, operand 0, single buffered']
    %8 = vsyncpa [#allocation3], 0
    %9 = vsyncpa [#allocation6], 0
    %10 = vsyncpa [#allocation4], 0
    // Predicated region
    $region2: #{tpu_custom_call.1} parent=1 // pred_check
      _
    $region3: #{tpu_custom_call.1} parent=1 // pred_check_branch
      %12 = sbr.rel (0) target = $region5
    $region4: #{tpu_custom_call.1} parent=1 // pred_region
      %s14 = ssub.s32 256, 256
      %15 = vsyncadd [#allocation3], %s14
      %s16 = sshll.u32 [#allocation2], 4
      %s17 = int_to_ptr.vmem [resolvable:$true] %s16
      %22 = dma.hbm_to_vmem [thread:$0]  %s0, 256, %s17, [#allocation3], 32, 32, 2
    $region5: #{tpu_custom_call.1} parent=1 // pred_fallthru
      _
    // Predicated region
    $region6: #{tpu_custom_call.1} parent=1 // pred_check
      _
    $region7: #{tpu_custom_call.1} parent=1 // pred_check_branch
      %24 = sbr.rel (0) target = $region9
    $region8: #{tpu_custom_call.1} parent=1 // pred_region
      %s26 = ssub.s32 64, 64
      %27 = vsyncadd [#allocation6], %s26
      %s28 = sshll.u32 [#allocation5], 4
      %s29 = int_to_ptr.vmem [resolvable:$true] %s28
      %34 = dma.hbm_to_vmem [thread:$0]  %s1, 64, %s29, [#allocation6], 16, 16, 1
    $region9: #{tpu_custom_call.1} parent=1 // pred_fallthru
      _
    // Predicated region
    $region10: #{tpu_custom_call.1} parent=1 // pred_check
      _
    $region11: #{tpu_custom_call.1} parent=1 // pred_check_branch
      %36 = sbr.rel (0) target = $region13
    $region12: #{tpu_custom_call.1} parent=1 // pred_region
      %s38 = ssub.s32 64, 64
      %39 = vsyncadd [#allocation6], %s38
      %s40 = sshll.u32 [#allocation7], 4
      %s41 = int_to_ptr.vmem [resolvable:$true] %s40
      %46 = dma.hbm_to_vmem [thread:$0]  %s2, 64, %s41, [#allocation6], 16, 16, 1
    $region13: #{tpu_custom_call.1} parent=1 // pred_fallthru
      _
    // Predicated region
    $region14: #{tpu_custom_call.1} parent=1 // pred_check
      _
    $region15: #{tpu_custom_call.1} parent=1 // pred_check_branch
      %48 = sbr.rel (0) target = $region17
    $region16: #{tpu_custom_call.1} parent=1 // pred_region
      %49 = dma.done [#allocation3], 256
    $region17: #{tpu_custom_call.1} parent=1 // pred_fallthru
      _
    // Predicated region
    $region18: #{tpu_custom_call.1} parent=1 // pred_check
      _
    $region19: #{tpu_custom_call.1} parent=1 // pred_check_branch
      %51 = sbr.rel (0) target = $region21
    $region20: #{tpu_custom_call.1} parent=1 // pred_region
      %52 = dma.done [#allocation6], 64
    $region21: #{tpu_custom_call.1} parent=1 // pred_fallthru
      _
    // Predicated region
    $region22: #{tpu_custom_call.1} parent=1 // pred_check
      _
    $region23: #{tpu_custom_call.1} parent=1 // pred_check_branch
      %54 = sbr.rel (0) target = $region25
    $region24: #{tpu_custom_call.1} parent=1 // pred_region
      %55 = dma.done [#allocation6], 64
    $region25: #{tpu_custom_call.1} parent=1 // pred_fallthru
      _
    %v56 = vld [vmem:[#allocation2] sm:$0x3]
    %v57 = vld [vmem:[#allocation2 + $0x2] sm:$0x3]
    %v58 = vld [vmem:[#allocation2 + $0x4] sm:$0x3]
    %v59 = vld [vmem:[#allocation2 + $0x6] sm:$0x3]
    %v60 = vld [vmem:[#allocation2 + $0x8] sm:$0x3]
    %v61 = vld [vmem:[#allocation2 + $0xa] sm:$0x3]
    %v62 = vld [vmem:[#allocation2 + $0xc] sm:$0x3]
    %v63 = vld [vmem:[#allocation2 + $0xe] sm:$0x3]
    %vm64 = vcmask 1041408
    %v65 = vsel %vm64, %v56, 0.0
    %v66 = vsel %vm64, %v57, 0.0
    %v67 = vadd.f32 %v65, %v66
    %v68 = vsel %vm64, %v58, 0.0
    %v69 = vadd.f32 %v67, %v68
    %v70 = vsel %vm64, %v59, 0.0
    %v71 = vadd.f32 %v69, %v70
    %v72 = vsel %vm64, %v60, 0.0
    %v73 = vsel %vm64, %v61, 0.0
    %v74 = vadd.f32 %v72, %v73
    %v75 = vsel %vm64, %v62, 0.0
    %v76 = vadd.f32 %v74, %v75
    %v77 = vsel %vm64, %v63, 0.0
    %v78 = vadd.f32 %v76, %v77
    %v79 = vmul.f32 %v71, 0.25
    %v80 = vmul.f32 %v78, 0.25
    %v81 = vsub.f32 %v56, %v79
    %v82 = vsub.f32 %v57, %v79
    %v83 = vsub.f32 %v58, %v79
    %v84 = vsub.f32 %v59, %v79
    %v85 = vsub.f32 %v60, %v80
    %v86 = vsub.f32 %v61, %v80
    %v87 = vsub.f32 %v62, %v80
    %v88 = vsub.f32 %v63, %v80
    %v89 = vmul.f32 %v81, %v81
    %v90 = vmul.f32 %v82, %v82
    %v91 = vmul.f32 %v83, %v83
    %v92 = vmul.f32 %v84, %v84
    %v93 = vmul.f32 %v85, %v85
    %v94 = vmul.f32 %v86, %v86
    %v95 = vmul.f32 %v87, %v87
    %v96 = vmul.f32 %v88, %v88
    %v97 = vsel %vm64, %v89, 0.0
    %v98 = vsel %vm64, %v90, 0.0
    %v99 = vadd.f32 %v97, %v98
    %v100 = vsel %vm64, %v91, 0.0
    %v101 = vadd.f32 %v99, %v100
    %v102 = vsel %vm64, %v92, 0.0
    %v103 = vadd.f32 %v101, %v102
    %v104 = vsel %vm64, %v93, 0.0
    %v105 = vsel %vm64, %v94, 0.0
    %v106 = vadd.f32 %v104, %v105
    %v107 = vsel %vm64, %v95, 0.0
    %v108 = vadd.f32 %v106, %v107
    %v109 = vsel %vm64, %v96, 0.0
    %v110 = vadd.f32 %v108, %v109
    %v111 = vmul.f32 %v103, 0.25
    %v112 = vmul.f32 %v110, 0.25
    %v113 = vadd.f32 %v111, 1e-06
    %v114 = vadd.f32 %v112, 1e-06
    %v115 = vrsqrt.pop %v113
    %v116 = vrsqrt.pop %v114
    %v117 = vmul.f32 %v81, %v115
    %v118 = vmul.f32 %v82, %v115
    %v119 = vmul.f32 %v83, %v115
    %v120 = vmul.f32 %v84, %v115
    %v121 = vmul.f32 %v85, %v116
    %v122 = vmul.f32 %v86, %v116
    %v123 = vmul.f32 %v87, %v116
    %v124 = vmul.f32 %v88, %v116
    %v125 = vld [vmem:[#allocation5] sm:$0x1]
    %v126 = vld [vmem:[#allocation5 + $0x1] sm:$0x1]
    %v127 = vld [vmem:[#allocation5 + $0x2] sm:$0x1]
    %v128 = vld [vmem:[#allocation5 + $0x3] sm:$0x1]
    %v129 = vld [vmem:[#allocation7] sm:$0x1]
    %v130 = vld [vmem:[#allocation7 + $0x1] sm:$0x1]
    %v131 = vld [vmem:[#allocation7 + $0x2] sm:$0x1]
    %v132 = vld [vmem:[#allocation7 + $0x3] sm:$0x1]
    %v137 = vlaneseq
    %v138 = vshrl.u32 %v137, 7
    %v139 = vsub.s32 0, %v138
    %v140 = vrot.slane %v125, %v139
    %v141 = vlaneseq
    %v142 = vshrl.u32 %v141, 7
    %v143 = vsub.s32 0, %v142
    %v144 = vrot.slane %v126, %v143
    %v145 = vlaneseq
    %v146 = vshrl.u32 %v145, 7
    %v147 = vsub.s32 0, %v146
    %v148 = vrot.slane %v127, %v147
    %v149 = vlaneseq
    %v150 = vshrl.u32 %v149, 7
    %v151 = vsub.s32 0, %v150
    %v152 = vrot.slane %v128, %v151
    %v157 = vmul.f32 %v117, %v140
    %v158 = vmul.f32 %v118, %v144
    %v159 = vmul.f32 %v119, %v148
    %v160 = vmul.f32 %v120, %v152
    %v161 = vmul.f32 %v121, %v140
    %v162 = vmul.f32 %v122, %v144
    %v163 = vmul.f32 %v123, %v148
    %v164 = vmul.f32 %v124, %v152
    %v169 = vlaneseq
    %v170 = vshrl.u32 %v169, 7
    %v171 = vsub.s32 0, %v170
    %v172 = vrot.slane %v129, %v171
    %v173 = vlaneseq
    %v174 = vshrl.u32 %v173, 7
    %v175 = vsub.s32 0, %v174
    %v176 = vrot.slane %v130, %v175
    %v177 = vlaneseq
    %v178 = vshrl.u32 %v177, 7
    %v179 = vsub.s32 0, %v178
    %v180 = vrot.slane %v131, %v179
    %v181 = vlaneseq
    %v182 = vshrl.u32 %v181, 7
    %v183 = vsub.s32 0, %v182
    %v184 = vrot.slane %v132, %v183
    %v189 = vadd.f32 %v157, %v172
    %v190 = vadd.f32 %v158, %v176
    %v191 = vadd.f32 %v159, %v180
    %v192 = vadd.f32 %v160, %v184
    %v193 = vadd.f32 %v161, %v172
    %v194 = vadd.f32 %v162, %v176
    %v195 = vadd.f32 %v163, %v180
    %v196 = vadd.f32 %v164, %v184
    %197 = vst [vmem:[#allocation8] sm:$0x3] %v189
    %198 = vst [vmem:[#allocation8 + $0x2] sm:$0x3] %v190
    %199 = vst [vmem:[#allocation8 + $0x4] sm:$0x3] %v191
    %200 = vst [vmem:[#allocation8 + $0x6] sm:$0x3] %v192
    %201 = vst [vmem:[#allocation8 + $0x8] sm:$0x3] %v193
    %202 = vst [vmem:[#allocation8 + $0xa] sm:$0x3] %v194
    %203 = vst [vmem:[#allocation8 + $0xc] sm:$0x3] %v195
    %204 = vst [vmem:[#allocation8 + $0xe] sm:$0x3] %v196
    // Predicated region
    $region26: #{tpu_custom_call.1} parent=1 // pred_check
      _
    $region27: #{tpu_custom_call.1} parent=1 // pred_check_branch
      %206 = sbr.rel (0) target = $region29
    $region28: #{tpu_custom_call.1} parent=1 // pred_region
      %s208 = ssub.s32 256, 256
      %209 = vsyncadd [#allocation4], %s208
      %s210 = sshll.u32 [#allocation8], 4
      %s211 = int_to_ptr.vmem [resolvable:$true] %s210
      %216 = dma.vmem_to_hbm [thread:$0]  %s211, 256, %s3, [#allocation4], 32, 32, 2
    $region29: #{tpu_custom_call.1} parent=1 // pred_fallthru
      _
    // Predicated region
    $region30: #{tpu_custom_call.1} parent=1 // pred_check
      _
    $region31: #{tpu_custom_call.1} parent=1 // pred_check_branch
      %218 = sbr.rel (0) target = $region33
    $region32: #{tpu_custom_call.1} parent=1 // pred_region
      %219 = dma.done [#allocation4], 256
    $region33: #{tpu_custom_call.1} parent=1 // pred_fallthru
      _
    %220 = vsyncpa [#allocation3], 1
    %221 = vsyncpa [#allocation6], 1
    %222 = vsyncpa [#allocation4], 1

</llo_original>
